<compile_context>
chip_gen: v7x
topology: tpu7x:2x2x1
jax: 0.10.0
libtpu: 0.0.40
codegen_flags: <defaults>
</compile_context>

<pallas_src>
import jax
import jax.numpy as jnp
from jax import lax
from jax.experimental import pallas as pl
from jax.experimental.pallas import tpu as pltpu


def _cam_kernel(x_ref, y_ref, gamma_ref, out_ref):
    # Blocks are (1, C, N); one batch element per grid step.
    x = x_ref[0]                         # (C, N)  -- query and value
    y = y_ref[0]                         # (C, N)  -- key

    # energy[c, c'] = sum_n x[c, n] * y[c', n]   -> (C, C) on the MXU,
    # contraction over the lane-dense N axis (no materialized transpose).
    energy = lax.dot_general(
        x, y, (((1,), (1,)), ((), ())),
        preferred_element_type=jnp.float32)              # (C, C)

    # energy_new = rowmax(energy) - energy, then softmax along the last axis.
    energy_new = jnp.max(energy, axis=-1, keepdims=True) - energy
    m = jnp.max(energy_new, axis=-1, keepdims=True)
    e = jnp.exp(energy_new - m)
    att = e / jnp.sum(e, axis=-1, keepdims=True)          # (C, C)

    # out = attention @ value  -> (C, N), N on lanes.
    out = jnp.dot(att, x, preferred_element_type=jnp.float32)

    gamma = gamma_ref[0]                                   # SMEM scalar
    out_ref[0] = gamma * out + x


def cam_module_forward(x, y, gamma):
    """CAM_Module.forward: x, y are (B, C, H, W, D) float32; gamma a scalar."""
    B, C, H, W, D = x.shape
    N = H * W * D

    xf = x.reshape(B, C, N)                                # free reshape
    yf = y.reshape(B, C, N)
    gamma_arr = jnp.asarray(gamma, jnp.float32).reshape(1)

    feat_spec = pl.BlockSpec((1, C, N), lambda b: (b, 0, 0))
    gamma_spec = pl.BlockSpec(memory_space=pltpu.MemorySpace.SMEM)

    out = pl.pallas_call(
        _cam_kernel,
        out_shape=jax.ShapeDtypeStruct((B, C, N), jnp.float32),
        grid_spec=pltpu.PrefetchScalarGridSpec(
            num_scalar_prefetch=0,
            grid=(B,),
            in_specs=[feat_spec, feat_spec, gamma_spec],
            out_specs=feat_spec),
        compiler_params=pltpu.CompilerParams(
            dimension_semantics=("parallel",)),
    )(xf, yf, gamma_arr)

    return out.reshape(B, C, H, W, D)


def _cam_reference(x, y, gamma):
    """Pure-JAX reference mirroring the PyTorch forward."""
    B, C = x.shape[:2]
    q = x.reshape(B, C, -1)
    k = y.reshape(B, C, -1)
    v = q
    energy = jnp.einsum('bcn,bdn->bcd', q, k)
    energy_new = jnp.max(energy, axis=-1, keepdims=True) - energy
    att = jax.nn.softmax(energy_new, axis=-1)
    out = jnp.einsum('bcd,bdn->bcn', att, v).reshape(x.shape)
    return gamma * out + x


if __name__ == "__main__":
    key = jax.random.PRNGKey(0)
    B, C, H, W, D = 2, 16, 8, 8, 4          # N = H*W*D = 256 (lane-dense)
    k1, k2 = jax.random.split(key)

    x = jax.random.normal(k1, (B, C, H, W, D), dtype=jnp.float32)
    y = jax.random.normal(k2, (B, C, H, W, D), dtype=jnp.float32)

    # PyTorch initializes gamma to 0 (which would make out == x); a nonzero
    # deterministic value is used so the attention path is actually exercised.
    gamma = jnp.float32(0.5)

    out = cam_module_forward(x, y, gamma)
    out = jax.block_until_ready(out)

    ref = _cam_reference(x, y, gamma)
    assert out.shape == (B, C, H, W, D)
    assert jnp.allclose(out, ref, atol=1e-4, rtol=1e-4), "mismatch vs reference"

    print("KERNEL_OK")
</pallas_src>

<mosaic_0001>
module attributes {stable_mosaic.version = 11 : i64} {
  func.func @_cam_kernel(%arg0: i32, %arg1: memref<1x16x256xf32, #tpu.memory_space<vmem>>, %arg2: memref<1x16x256xf32, #tpu.memory_space<vmem>>, %arg3: memref<1xf32, #tpu.memory_space<smem>>, %arg4: memref<1x16x256xf32, #tpu.memory_space<vmem>>) attributes {dimension_semantics = [#tpu.dimension_semantics<parallel>], iteration_bounds = array<i64: 2>, scalar_prefetch = 0 : i64, scratch_operands = 0 : i64, tpu.core_type = #tpu.core_type<tc>, window_params = [{transform_indices = @transform_0, window_bounds = array<i64: 1, 16, 256>}, {transform_indices = @transform_1, window_bounds = array<i64: 1, 16, 256>}, {transform_indices = @transform_2, window_bounds = array<i64: 1>}, {transform_indices = @transform_3, window_bounds = array<i64: 1, 16, 256>}]} {
    %c0 = arith.constant 0 : index
    %c0_0 = arith.constant 0 : index
    %c0_1 = arith.constant 0 : index
    %0 = vector.load %arg1[%c0, %c0_0, %c0_1] : memref<1x16x256xf32, #tpu.memory_space<vmem>>, vector<1x16x256xf32>
    %1 = vector.shape_cast %0 : vector<1x16x256xf32> to vector<16x256xf32>
    %c0_2 = arith.constant 0 : index
    %c0_3 = arith.constant 0 : index
    %c0_4 = arith.constant 0 : index
    %2 = vector.load %arg2[%c0_2, %c0_3, %c0_4] : memref<1x16x256xf32, #tpu.memory_space<vmem>>, vector<1x16x256xf32>
    %3 = vector.shape_cast %2 : vector<1x16x256xf32> to vector<16x256xf32>
    %cst = arith.constant dense<0.000000e+00> : vector<16x16xf32>
    %4 = tpu.matmul %1, %3, %cst {dimension_numbers = #tpu.dot_dimension_numbers<[1], [1], [0], [0], [0, 0, 1, 0], [], []>} : vector<16x256xf32>, vector<16x256xf32>, vector<16x16xf32> -> vector<16x16xf32>
    %cst_5 = arith.constant dense<0xFF800000> : vector<16xf32>
    %5 = vector.multi_reduction <maximumf>, %4, %cst_5 [1] : vector<16x16xf32> to vector<16xf32>
    %6 = vector.shape_cast %5 : vector<16xf32> to vector<16x1xf32>
    %7 = vector.broadcast %6 : vector<16x1xf32> to vector<16x16xf32>
    %8 = arith.subf %7, %4 : vector<16x16xf32>
    %cst_6 = arith.constant dense<0xFF800000> : vector<16xf32>
    %9 = vector.multi_reduction <maximumf>, %8, %cst_6 [1] : vector<16x16xf32> to vector<16xf32>
    %10 = vector.shape_cast %9 : vector<16xf32> to vector<16x1xf32>
    %11 = vector.broadcast %10 : vector<16x1xf32> to vector<16x16xf32>
    %12 = arith.subf %8, %11 : vector<16x16xf32>
    %13 = math.exp %12 : vector<16x16xf32>
    %cst_7 = arith.constant dense<0.000000e+00> : vector<16xf32>
    %14 = vector.multi_reduction <add>, %13, %cst_7 [1] : vector<16x16xf32> to vector<16xf32>
    %15 = vector.shape_cast %14 : vector<16xf32> to vector<16x1xf32>
    %16 = vector.broadcast %15 : vector<16x1xf32> to vector<16x16xf32>
    %17 = arith.divf %13, %16 : vector<16x16xf32>
    %cst_8 = arith.constant dense<0.000000e+00> : vector<16x256xf32>
    %18 = tpu.matmul %17, %1, %cst_8 {dimension_numbers = #tpu.dot_dimension_numbers<[1], [0], [0], [1], [0, 0, 1, 1], [], []>} : vector<16x16xf32>, vector<16x256xf32>, vector<16x256xf32> -> vector<16x256xf32>
    %c0_9 = arith.constant 0 : index
    %19 = memref.load %arg3[%c0_9] : memref<1xf32, #tpu.memory_space<smem>>
    %20 = vector.broadcast %19 : f32 to vector<16x256xf32>
    %21 = arith.mulf %20, %18 : vector<16x256xf32>
    %22 = arith.addf %21, %1 : vector<16x256xf32>
    %c0_10 = arith.constant 0 : index
    %c0_11 = arith.constant 0 : index
    %c0_12 = arith.constant 0 : index
    %23 = vector.load %arg4[%c0_10, %c0_11, %c0_12] : memref<1x16x256xf32, #tpu.memory_space<vmem>>, vector<1x16x256xf32>
    %24 = vector.shape_cast %23 : vector<1x16x256xf32> to vector<16x256xf32>
    %25 = vector.shape_cast %22 : vector<16x256xf32> to vector<1x16x256xf32>
    tpu.vector_store %arg4[%c0_10, %c0_11, %c0_12], %25 {strides = array<i32>} : memref<1x16x256xf32, #tpu.memory_space<vmem>>, vector<1x16x256xf32>,
    return
  }
  func.func @transform_0(%arg0: i32) -> (i32, i32, i32) {
    %c0_i32 = arith.constant 0 : i32
    %c0_i32_0 = arith.constant 0 : i32
    %c0_i32_1 = arith.constant 0 : i32
    return %arg0, %c0_i32, %c0_i32_0 : i32, i32, i32
  }
  func.func @transform_1(%arg0: i32) -> (i32, i32, i32) {
    %c0_i32 = arith.constant 0 : i32
    %c0_i32_0 = arith.constant 0 : i32
    %c0_i32_1 = arith.constant 0 : i32
    return %arg0, %c0_i32, %c0_i32_0 : i32, i32, i32
  }
  func.func @transform_2(%arg0: i32) -> i32 {
    %c0_i32 = arith.constant 0 : i32
    %c0_i32_0 = arith.constant 0 : i32
    return %c0_i32 : i32
  }
  func.func @transform_3(%arg0: i32) -> (i32, i32, i32) {
    %c0_i32 = arith.constant 0 : i32
    %c0_i32_0 = arith.constant 0 : i32
    %c0_i32_1 = arith.constant 0 : i32
    return %arg0, %c0_i32, %c0_i32_0 : i32, i32, i32
  }
}

</mosaic_0001>

<llo_original>
// kernel: tpu_custom_call.1
$region0: #{tpu_custom_call.1}
  #allocation0 [shape = 'u32[]', space=smem, size = 0x4, offset = 0x4, fixed_abs, tag = 'smem constant byte address 0x4 - core index']
  #allocation1 [shape = 'u32[144,128]{1,0:T(1,128)}', space=vmem, size = 0x12000, scoped, tag = 'internal scratch']
  #allocation2 [shape = 'f32[1]{0:T(128)S(6)}', space=smem, size = 0x200, scoped, tag = 'scoped memory for tpu_custom_call.1']
  %s0 = inlined_call_operand.hbm [shape: f32[2,16,256], index: 0, kind: input, shape index: {}]
  %s1 = inlined_call_operand.hbm [shape: f32[2,16,256], index: 1, kind: input, shape index: {}]
  %s2 = inlined_call_operand.<no memory space> [shape: f32[1], index: 2, kind: input, shape index: {}]
  %s3 = inlined_call_operand.hbm [shape: f32[2,16,256], index: 3, kind: output, shape index: {}]
  %s4 = sld [smem:[#allocation0]]
  $region53: #{tpu_custom_call.1} parent=0
    _
  %s6 = ssub.s32 1, %s4
  %s7 = scalar_select 0, %s6, %s4
  %8 = sst [smem:[#allocation2]] %s2
  $region1: #{tpu_custom_call.1} parent=0
    #allocation3 [shape = 'u8[32768]{0}', space=vmem, size = 0x8000, scoped, tag = 'input window, operand 0']
    #allocation4 [shape = 's32[2]{0}', space=sflag, size = 0x8, scoped, tag = 'scoped memory for tpu_custom_call.1']
    #allocation5 [shape = 's32[2]{0}', space=sflag, size = 0x8, scoped, tag = 'scoped memory for tpu_custom_call.1']
    #allocation6 [shape = 'u8[32768]{0}', space=vmem, size = 0x8000, scoped, tag = 'input window, operand 1']
    #allocation7 [shape = 's32[2]{0}', space=sflag, size = 0x8, scoped, tag = 'scoped memory for tpu_custom_call.1']
    #allocation8 [shape = 'u8[32768]{0}', space=vmem, size = 0x8000, scoped, tag = 'output window, operand 0']
    %9 = vsyncpa [#allocation4], 0
    %s10 = scalar_lea.sflag [#allocation4], 1
    %11 = vsyncpa %s10, 0
    %12 = vsyncpa [#allocation7], 0
    %s13 = scalar_lea.sflag [#allocation7], 1
    %14 = vsyncpa %s13, 0
    %15 = vsyncpa [#allocation5], 0
    %s16 = scalar_lea.sflag [#allocation5], 1
    %17 = vsyncpa %s16, 0
    loop: start=0, step=1, limit=4
    $region2: #{tpu_custom_call.1} parent=1 // loop_pre_header
      _
    $region3: #{tpu_custom_call.1} parent=1 // loop_header
      %s19 = sphi 0, %s23
      %p20 = scmp.ge.s32.totalorder %s19, 4
      %s29 = sphi 0, %s31
      %s32 = sphi 0, %s29
      %s33 = sphi 0, %s32
      %s49 = sphi 0, %s33
      %s55 = sphi 0, %s57
      %s58 = sphi 0, %s55
      %s59 = sphi 0, %s58
      %s75 = sphi 0, %s59
      %s79 = sphi 0, %s79
      %s81 = sphi 0, %s79
      %s82 = sphi 0, %s81
      %s96 = sphi 0, %s82
      %s102 = sphi 0, %s104
      %s105 = sphi 0, %s102
      %s106 = sphi 0, %s105
      %s122 = sphi 0, %s106
    $region4: #{tpu_custom_call.1} parent=1 // loop_header_branch
      %22 = sbr.rel (%p20) target = $region8
    $region5: #{tpu_custom_call.1} parent=1 // loop_body
      %s24 = ssub.s32 %s19, 1
      %s25 = ssub.s32 %s19, 2
      %s26 = sadd.s32 %s19, 1
      %s27 = ssub.s32 %s19, %s26
      %p28 = scmp.eq.s32.totalorder %s27, 0
      %s30 = sadd.s32 %s29, 1
      %s31 = scalar_select %p28, %s29, %s30
      %p34 = pneg %p28
      %p35 = scmp.eq.s32.totalorder %s19, 1
      %p36 = por %p34, %p35
      %p37 = scmp.ne.s32.totalorder %s29, %s32
      %p38 = scmp.eq.s32.totalorder %s19, 0
      %p39 = por %p37, %p38
      %p40 = scmp.ne.s32.totalorder %s29, %s32
      %p41 = scmp.eq.s32.totalorder %s24, 1
      %p42 = por %p40, %p41
      %p43 = scmp.ne.s32.totalorder %s32, %s33
      %p44 = scmp.eq.s32.totalorder %s24, 0
      %p45 = por %p43, %p44
      %p46 = scmp.ne.s32.totalorder %s32, %s33
      %p47 = scmp.eq.s32.totalorder %s25, 1
      %p48 = por %p46, %p47
      %p50 = scmp.ne.s32.totalorder %s33, %s49
      %p51 = scmp.eq.s32.totalorder %s25, 0
      %p52 = por %p50, %p51
      %s53 = ssub.s32 %s19, %s26
      %p54 = scmp.eq.s32.totalorder %s53, 0
      %s56 = sadd.s32 %s55, 1
      %s57 = scalar_select %p54, %s55, %s56
      %p60 = pneg %p54
      %p61 = scmp.eq.s32.totalorder %s19, 1
      %p62 = por %p60, %p61
      %p63 = scmp.ne.s32.totalorder %s55, %s58
      %p64 = scmp.eq.s32.totalorder %s19, 0
      %p65 = por %p63, %p64
      %p66 = scmp.ne.s32.totalorder %s55, %s58
      %p67 = scmp.eq.s32.totalorder %s24, 1
      %p68 = por %p66, %p67
      %p69 = scmp.ne.s32.totalorder %s58, %s59
      %p70 = scmp.eq.s32.totalorder %s24, 0
      %p71 = por %p69, %p70
      %p72 = scmp.ne.s32.totalorder %s58, %s59
      %p73 = scmp.eq.s32.totalorder %s25, 1
      %p74 = por %p72, %p73
      %p76 = scmp.ne.s32.totalorder %s59, %s75
      %p77 = scmp.eq.s32.totalorder %s25, 0
      %p78 = por %p76, %p77
      %s80 = sadd.s32 %s79, 1
      %p83 = scmp.eq.s32.totalorder %s19, 1
      %p84 = scmp.ne.s32.totalorder %s79, %s81
      %p85 = scmp.eq.s32.totalorder %s19, 0
      %p86 = por %p84, %p85
      %p87 = scmp.ne.s32.totalorder %s79, %s81
      %p88 = scmp.eq.s32.totalorder %s24, 1
      %p89 = por %p87, %p88
      %p90 = scmp.ne.s32.totalorder %s81, %s82
      %p91 = scmp.eq.s32.totalorder %s24, 0
      %p92 = por %p90, %p91
      %p93 = scmp.ne.s32.totalorder %s81, %s82
      %p94 = scmp.eq.s32.totalorder %s25, 1
      %p95 = por %p93, %p94
      %p97 = scmp.ne.s32.totalorder %s82, %s96
      %p98 = scmp.eq.s32.totalorder %s25, 0
      %p99 = por %p97, %p98
      %s100 = ssub.s32 %s19, %s26
      %p101 = scmp.eq.s32.totalorder %s100, 0
      %s103 = sadd.s32 %s102, 1
      %s104 = scalar_select %p101, %s102, %s103
      %p107 = pneg %p101
      %p108 = scmp.eq.s32.totalorder %s19, 1
      %p109 = por %p107, %p108
      %p110 = scmp.ne.s32.totalorder %s102, %s105
      %p111 = scmp.eq.s32.totalorder %s19, 0
      %p112 = por %p110, %p111
      %p113 = scmp.ne.s32.totalorder %s102, %s105
      %p114 = scmp.eq.s32.totalorder %s24, 1
      %p115 = por %p113, %p114
      %p116 = scmp.ne.s32.totalorder %s105, %s106
      %p117 = scmp.eq.s32.totalorder %s24, 0
      %p118 = por %p116, %p117
      %p119 = scmp.ne.s32.totalorder %s105, %s106
      %p120 = scmp.eq.s32.totalorder %s25, 1
      %p121 = por %p119, %p120
      %p123 = scmp.ne.s32.totalorder %s106, %s122
      %p124 = scmp.eq.s32.totalorder %s25, 0
      %p125 = por %p123, %p124
      %p126 = scmp.le.s32.totalorder 1, %s19
      %p127 = scmp.lt.s32.totalorder %s19, 3
      %p128 = pnand %p126, %p127
      %p129 = pneg %p128
      // Predicated region
      $region9: #{tpu_custom_call.1} parent=5 // pred_check
        _
      $region10: #{tpu_custom_call.1} parent=5 // pred_check_branch
        %131 = sbr.rel (%p128) target = $region12
      $region11: #{tpu_custom_call.1} parent=5 // pred_region
        %s132 = ssub.s32 %s19, 1
        // Predicated region
        $region13: #{tpu_custom_call.1} parent=11 // pred_check
          %p133 = pneg %p92
        $region14: #{tpu_custom_call.1} parent=11 // pred_check_branch
          %135 = sbr.rel (%p133) target = $region16
        $region15: #{tpu_custom_call.1} parent=11 // pred_region
          _
        $region16: #{tpu_custom_call.1} parent=11 // pred_fallthru
          _
      $region12: #{tpu_custom_call.1} parent=5 // pred_fallthru
        _
      %p136 = scmp.lt.s32.totalorder %s19, 2
      // Predicated region
      $region17: #{tpu_custom_call.1} parent=5 // pred_check
        %p137 = pneg %p136
      $region18: #{tpu_custom_call.1} parent=5 // pred_check_branch
        %139 = sbr.rel (%p137) target = $region20
      $region19: #{tpu_custom_call.1} parent=5 // pred_region
        // Predicated region
        $region21: #{tpu_custom_call.1} parent=19 // pred_check
          %p140 = pneg %p39
        $region22: #{tpu_custom_call.1} parent=19 // pred_check_branch
          %142 = sbr.rel (%p140) target = $region24
        $region23: #{tpu_custom_call.1} parent=19 // pred_region
          %s143 = sand.u32 %s29, 1
          %s144 = scalar_lea.sflag [#allocation4], %s143
          %s145 = sand.u32 %s29, 1
          %s146 = smul.addr %s145, 32
          %s147 = scalar_lea.vmem [#allocation3], %s146
          %s149 = ssub.s32 512, 512
          %150 = vsyncadd %s144, %s149
          %s151 = smul.addr %s19, 4
          %s152 = smul.addr %s151, 128
          %s153 = scalar_lea.hbm %s0, %s152
          %s154 = sshll.u32 %s147, 4
          %s155 = int_to_ptr.vmem [resolvable:$true] %s154
          %160 = dma.hbm_to_vmem [thread:$0]  %s153, 512, %s155, %s144, 256, 256, 16
        $region24: #{tpu_custom_call.1} parent=19 // pred_fallthru
          _
        // Predicated region
        $region25: #{tpu_custom_call.1} parent=19 // pred_check
          %p161 = pneg %p65
        $region26: #{tpu_custom_call.1} parent=19 // pred_check_branch
          %163 = sbr.rel (%p161) target = $region28
        $region27: #{tpu_custom_call.1} parent=19 // pred_region
          %s164 = sand.u32 %s55, 1
          %s165 = scalar_lea.sflag [#allocation7], %s164
          %s166 = sand.u32 %s55, 1
          %s167 = smul.addr %s166, 32
          %s168 = scalar_lea.vmem [#allocation6], %s167
          %s170 = ssub.s32 512, 512
          %171 = vsyncadd %s165, %s170
          %s172 = smul.addr %s19, 4
          %s173 = smul.addr %s172, 128
          %s174 = scalar_lea.hbm %s1, %s173
          %s175 = sshll.u32 %s168, 4
          %s176 = int_to_ptr.vmem [resolvable:$true] %s175
          %181 = dma.hbm_to_vmem [thread:$0]  %s174, 512, %s176, %s165, 256, 256, 16
        $region28: #{tpu_custom_call.1} parent=19 // pred_fallthru
          _
      $region20: #{tpu_custom_call.1} parent=5 // pred_fallthru
        _
      %p182 = scmp.le.s32.totalorder 1, %s19
      %p183 = scmp.lt.s32.totalorder %s19, 3
      %p184 = pnand %p182, %p183
      %p185 = pneg %p184
      // Predicated region
      $region29: #{tpu_custom_call.1} parent=5 // pred_check
        _
      $region30: #{tpu_custom_call.1} parent=5 // pred_check_branch
        %187 = sbr.rel (%p184) target = $region32
      $region31: #{tpu_custom_call.1} parent=5 // pred_region
        %s188 = ssub.s32 %s19, 1
        %s189 = sand.u32 %s32, 1
        %s190 = scalar_lea.sflag [#allocation4], %s189
        %s191 = sand.u32 %s32, 1
        %s192 = smul.addr %s191, 32
        %s193 = scalar_lea.vmem [#allocation3], %s192
        // Predicated region
        $region33: #{tpu_custom_call.1} parent=31 // pred_check
          %p194 = pneg %p45
        $region34: #{tpu_custom_call.1} parent=31 // pred_check_branch
          %196 = sbr.rel (%p194) target = $region36
        $region35: #{tpu_custom_call.1} parent=31 // pred_region
          %197 = dma.done %s190, 512
        $region36: #{tpu_custom_call.1} parent=31 // pred_fallthru
          _
        %s198 = sand.u32 %s58, 1
        %s199 = scalar_lea.sflag [#allocation7], %s198
        %s200 = sand.u32 %s58, 1
        %s201 = smul.addr %s200, 32
        %s202 = scalar_lea.vmem [#allocation6], %s201
        // Predicated region
        $region37: #{tpu_custom_call.1} parent=31 // pred_check
          %p203 = pneg %p71
        $region38: #{tpu_custom_call.1} parent=31 // pred_check_branch
          %205 = sbr.rel (%p203) target = $region40
        $region39: #{tpu_custom_call.1} parent=31 // pred_region
          %206 = dma.done %s199, 512
        $region40: #{tpu_custom_call.1} parent=31 // pred_fallthru
          _
        %s207 = sand.u32 %s32, 1
        %s208 = scalar_lea.sflag [#allocation4], %s207
        %s209 = sand.u32 %s32, 1
        %s210 = smul.addr %s209, 32
        %s211 = scalar_lea.vmem [#allocation3], %s210
        %p212 = pneg %p45
        %p213 = pneg %p42
        %s214 = sand.u32 %s58, 1
        %s215 = scalar_lea.sflag [#allocation7], %s214
        %s216 = sand.u32 %s58, 1
        %s217 = smul.addr %s216, 32
        %s218 = scalar_lea.vmem [#allocation6], %s217
        %p219 = pneg %p71
        %p220 = pneg %p68
        %p221 = pneg %p92
        %p222 = pneg %p89
        %p223 = pneg %p118
        %p224 = pneg %p115
        %s225 = sand.u32 %s105, 1
        %s226 = scalar_lea.sflag [#allocation5], %s225
        %s227 = sand.u32 %s105, 1
        %s228 = smul.addr %s227, 32
        %s229 = scalar_lea.vmem [#allocation8], %s228
        %v230 = vld [vmem:[%s193] sm:$0xff]
        %v231 = vld [vmem:[%s193 + $0x8] sm:$0xff]
        %v232 = vld [vmem:[%s193 + $0x10] sm:$0xff]
        %v233 = vld [vmem:[%s193 + $0x18] sm:$0xff]
        %v234 = vld [vmem:[%s202] sm:$0xff]
        %v235 = vld [vmem:[%s202 + $0x8] sm:$0xff]
        %v236 = vld [vmem:[%s202 + $0x10] sm:$0xff]
        %v237 = vld [vmem:[%s202 + $0x18] sm:$0xff]
        %238 = vmatprep.subr.mxu0 %v235
        %239 = vmatpush1.xpose.msra.mxu0 %v234
        %240 = vmatprep.subr.mxu0 %v237
        %241 = vmatpush1.xpose.msra.mxu0 %v236
        %242 = vmatprep.subr.mxu0 0.0
        %243 = vmatpush1.xpose.msra.mxu0 0.0
        %244 = vmatprep.subr.mxu0 0.0
        %245 = vmatpush1.xpose.msra.mxu0 0.0
        %246 = vmatprep.subr.mxu0 0.0
        %247 = vmatpush1.xpose.msra.mxu0 0.0
        %248 = vmatprep.subr.mxu0 0.0
        %249 = vmatpush1.xpose.msra.mxu0 0.0
        %250 = vmatprep.subr.mxu0 0.0
        %251 = vmatpush1.xpose.msra.mxu0 0.0
        %252 = vmatprep.subr.mxu0 0.0
        %253 = vmatpush1.xpose.msra.mxu0 0.0
        %254 = vmatprep.subr.mxu0 0.0
        %255 = vmatpush1.xpose.msra.mxu0 0.0
        %256 = vmatprep.subr.mxu0 0.0
        %257 = vmatpush1.xpose.msra.mxu0 0.0
        %258 = vmatprep.subr.mxu0 0.0
        %259 = vmatpush1.xpose.msra.mxu0 0.0
        %260 = vmatprep.subr.mxu0 0.0
        %261 = vmatpush1.xpose.msra.mxu0 0.0
        %262 = vmatprep.subr.mxu0 0.0
        %263 = vmatpush1.xpose.msra.mxu0 0.0
        %264 = vmatprep.subr.mxu0 0.0
        %265 = vmatpush1.xpose.msra.mxu0 0.0
        %266 = vmatprep.subr.mxu0 0.0
        %267 = vmatpush1.xpose.msra.mxu0 0.0
        %268 = vmatprep.subr.mxu0 0.0
        %269 = vmatpush1.xpose.msra.mxu0 0.0
        %270 = vmatprep.subr.mxu0 0.0
        %271 = vmatpush1.xpose.msra.mxu0 0.0
        %272 = vmatprep.subr.mxu0 0.0
        %273 = vmatpush1.xpose.msra.mxu0 0.0
        %274 = vmatprep.subr.mxu0 0.0
        %275 = vmatpush1.xpose.msra.mxu0 0.0
        %276 = vmatprep.subr.mxu0 0.0
        %277 = vmatpush1.xpose.msra.mxu0 0.0
        %278 = vmatprep.subr.mxu0 0.0
        %279 = vmatpush1.xpose.msra.mxu0 0.0
        %280 = vmatprep.subr.mxu0 0.0
        %281 = vmatpush1.xpose.msra.mxu0 0.0
        %282 = vmatprep.subr.mxu0 0.0
        %283 = vmatpush1.xpose.msra.mxu0 0.0
        %284 = vmatprep.subr.mxu0 0.0
        %285 = vmatpush1.xpose.msra.mxu0 0.0
        %286 = vmatprep.subr.mxu0 0.0
        %287 = vmatpush1.xpose.msra.mxu0 0.0
        %288 = vmatprep.subr.mxu0 0.0
        %289 = vmatpush1.xpose.msra.mxu0 0.0
        %290 = vmatprep.subr.mxu0 0.0
        %291 = vmatpush1.xpose.msra.mxu0 0.0
        %292 = vmatprep.subr.mxu0 0.0
        %293 = vmatpush1.xpose.msra.mxu0 0.0
        %294 = vmatprep.subr.mxu0 0.0
        %295 = vmatpush1.xpose.msra.mxu0 0.0
        %296 = vmatprep.subr.mxu0 0.0
        %297 = vmatpush1.xpose.msra.mxu0 0.0
        %298 = vmatprep.subr.mxu0 0.0
        %299 = vmatpush1.xpose.msra.mxu0 0.0
        %300 = vmatprep.subr.mxu0 0.0
        %301 = vmatpush1.xpose.msra.mxu0 0.0
        %302 = vmatprep.mubr.f32.mxu0 %v231
        %303 = vmatmul.mubr.f32.gmra.mrb[0].mxu0 %v230
        %v304 = vpop.f32.mrb[0].mxu0
        %v305 = vadd.f32 0.0, %v304
        %v306 = vpop.f32.mrb[0].mxu0
        %307 = vmatprep.mubr.f32.mxu0 %v233
        %308 = vmatmul.mubr.f32.gmra.mrb[0].mxu0 %v232
        %v309 = vpop.f32.mrb[0].mxu0
        %v310 = vadd.f32 0.0, %v309
        %v311 = vpop.f32.mrb[0].mxu0
        %312 = vdwg.mxu0
        %vm313 = vcmask 130048
        %v314 = vsel %vm313, %v305, -inf
        %315 = vmax.xlane.f32.xlu0 %v314
        %v316 = vpop.xlane.xlu0 %315
        %v317 = vsel %vm313, %v310, -inf
        %318 = vmax.xlane.f32.xlu0 %v317
        %v319 = vpop.xlane.xlu0 %318
        %v320 = vsub.f32 %v316, %v305
        %v321 = vsub.f32 %v319, %v310
        %v322 = vsel %vm313, %v320, -inf
        %323 = vmax.xlane.f32.xlu0 %v322
        %v324 = vpop.xlane.xlu0 %323
        %v325 = vsel %vm313, %v321, -inf
        %326 = vmax.xlane.f32.xlu0 %v325
        %v327 = vpop.xlane.xlu0 %326
        %v328 = vsub.f32 %v320, %v324
        %v329 = vsub.f32 %v321, %v327
        %v330 = vmul.f32 %v328, 1.442695
        %v331 = vpow.pop %v330
        %v332 = vmul.f32 %v329, 1.442695
        %v333 = vpow.pop %v332
        %v334 = vsel %vm313, %v331, 0.0
        %335 = vadd.xlane.f32.xlu0 %v334
        %v336 = vpop.xlane.xlu0 %335
        %v337 = vsel %vm313, %v333, 0.0
        %338 = vadd.xlane.f32.xlu0 %v337
        %v339 = vpop.xlane.xlu0 %338
        %v340 = vrcp.pop %v336
        %v341 = vmul.f32 %v331, %v340
        %v342 = vrcp.pop %v339
        %v343 = vmul.f32 %v333, %v342
        %v345 = vsel %vm313, %v341, 0
        %v348 = vsel %vm313, %v343, 0
        %350 = vmatprep.subr.mxu0 %v231
        %351 = vmatpush1.msra.mxu0 %v230
        %352 = vmatprep.subr.mxu0 %v233
        %353 = vmatpush1.msra.mxu0 %v232
        %354 = vmatprep.subr.mxu0 0.0
        %355 = vmatpush1.msra.mxu0 0.0
        %356 = vmatprep.subr.mxu0 0.0
        %357 = vmatpush1.msra.mxu0 0.0
        %358 = vmatprep.subr.mxu0 0.0
        %359 = vmatpush1.msra.mxu0 0.0
        %360 = vmatprep.subr.mxu0 0.0
        %361 = vmatpush1.msra.mxu0 0.0
        %362 = vmatprep.subr.mxu0 0.0
        %363 = vmatpush1.msra.mxu0 0.0
        %364 = vmatprep.subr.mxu0 0.0
        %365 = vmatpush1.msra.mxu0 0.0
        %366 = vmatprep.subr.mxu0 0.0
        %367 = vmatpush1.msra.mxu0 0.0
        %368 = vmatprep.subr.mxu0 0.0
        %369 = vmatpush1.msra.mxu0 0.0
        %370 = vmatprep.subr.mxu0 0.0
        %371 = vmatpush1.msra.mxu0 0.0
        %372 = vmatprep.subr.mxu0 0.0
        %373 = vmatpush1.msra.mxu0 0.0
        %374 = vmatprep.subr.mxu0 0.0
        %375 = vmatpush1.msra.mxu0 0.0
        %376 = vmatprep.subr.mxu0 0.0
        %377 = vmatpush1.msra.mxu0 0.0
        %378 = vmatprep.subr.mxu0 0.0
        %379 = vmatpush1.msra.mxu0 0.0
        %380 = vmatprep.subr.mxu0 0.0
        %381 = vmatpush1.msra.mxu0 0.0
        %382 = vmatprep.subr.mxu0 0.0
        %383 = vmatpush1.msra.mxu0 0.0
        %384 = vmatprep.subr.mxu0 0.0
        %385 = vmatpush1.msra.mxu0 0.0
        %386 = vmatprep.subr.mxu0 0.0
        %387 = vmatpush1.msra.mxu0 0.0
        %388 = vmatprep.subr.mxu0 0.0
        %389 = vmatpush1.msra.mxu0 0.0
        %390 = vmatprep.subr.mxu0 0.0
        %391 = vmatpush1.msra.mxu0 0.0
        %392 = vmatprep.subr.mxu0 0.0
        %393 = vmatpush1.msra.mxu0 0.0
        %394 = vmatprep.subr.mxu0 0.0
        %395 = vmatpush1.msra.mxu0 0.0
        %396 = vmatprep.subr.mxu0 0.0
        %397 = vmatpush1.msra.mxu0 0.0
        %398 = vmatprep.subr.mxu0 0.0
        %399 = vmatpush1.msra.mxu0 0.0
        %400 = vmatprep.subr.mxu0 0.0
        %401 = vmatpush1.msra.mxu0 0.0
        %402 = vmatprep.subr.mxu0 0.0
        %403 = vmatpush1.msra.mxu0 0.0
        %404 = vmatprep.subr.mxu0 0.0
        %405 = vmatpush1.msra.mxu0 0.0
        %406 = vmatprep.subr.mxu0 0.0
        %407 = vmatpush1.msra.mxu0 0.0
        %408 = vmatprep.subr.mxu0 0.0
        %409 = vmatpush1.msra.mxu0 0.0
        %410 = vmatprep.subr.mxu0 0.0
        %411 = vmatpush1.msra.mxu0 0.0
        %412 = vmatprep.subr.mxu0 0.0
        %413 = vmatpush1.msra.mxu0 0.0
        %414 = vmatprep.mubr.f32.mxu0 0.0
        %415 = vmatmul.mubr.f32.gmra.mrb[0].mxu0 %v345
        %v416 = vpop.f32.mrb[0].mxu0
        %v417 = vadd.f32 0.0, %v416
        %v418 = vpop.f32.mrb[0].mxu0
        %v419 = vadd.f32 0.0, %v418
        %420 = vmatprep.mubr.f32.mxu0 0.0
        %421 = vmatmul.mubr.f32.gmra.mrb[0].mxu0 %v348
        %v422 = vpop.f32.mrb[0].mxu0
        %v423 = vadd.f32 0.0, %v422
        %v424 = vpop.f32.mrb[0].mxu0
        %v425 = vadd.f32 0.0, %v424
        %426 = vdwg.mxu0
        %s427 = sld [smem:[#allocation2]]
        %v428 = vstv %s427
        %v429 = vmul.f32 %v428, %v417
        %v430 = vmul.f32 %v428, %v419
        %v431 = vmul.f32 %v428, %v423
        %v432 = vmul.f32 %v428, %v425
        %v433 = vadd.f32 %v429, %v230
        %v434 = vadd.f32 %v430, %v231
        %v435 = vadd.f32 %v431, %v232
        %v436 = vadd.f32 %v432, %v233
        %437 = vst [vmem:[%s229] sm:$0xff] %v433
        %438 = vst [vmem:[%s229 + $0x8] sm:$0xff] %v434
        %439 = vst [vmem:[%s229 + $0x10] sm:$0xff] %v435
        %440 = vst [vmem:[%s229 + $0x18] sm:$0xff] %v436
        %s441 = sand.u32 %s105, 1
        %s442 = scalar_lea.sflag [#allocation5], %s441
        %s443 = sand.u32 %s105, 1
        %s444 = smul.addr %s443, 32
        %s445 = scalar_lea.vmem [#allocation8], %s444
        // Predicated region
        $region41: #{tpu_custom_call.1} parent=31 // pred_check
          %p446 = pneg %p115
        $region42: #{tpu_custom_call.1} parent=31 // pred_check_branch
          %448 = sbr.rel (%p446) target = $region44
        $region43: #{tpu_custom_call.1} parent=31 // pred_region
          %s450 = ssub.s32 512, 512
          %451 = vsyncadd %s442, %s450
          %s452 = smul.addr %s24, 4
          %s453 = smul.addr %s452, 128
          %s454 = scalar_lea.hbm %s3, %s453
          %s455 = sshll.u32 %s445, 4
          %s456 = int_to_ptr.vmem [resolvable:$true] %s455
          %461 = dma.vmem_to_hbm [thread:$0]  %s456, 512, %s454, %s442, 256, 256, 16
        $region44: #{tpu_custom_call.1} parent=31 // pred_fallthru
          _
      $region32: #{tpu_custom_call.1} parent=5 // pred_fallthru
        _
      %p462 = scmp.le.s32.totalorder 2, %s19
      // Predicated region
      $region45: #{tpu_custom_call.1} parent=5 // pred_check
        %p463 = pneg %p462
      $region46: #{tpu_custom_call.1} parent=5 // pred_check_branch
        %465 = sbr.rel (%p463) target = $region48
      $region47: #{tpu_custom_call.1} parent=5 // pred_region
        %s466 = ssub.s32 %s19, 2
        // Predicated region
        $region49: #{tpu_custom_call.1} parent=47 // pred_check
          %p467 = pneg %p121
        $region50: #{tpu_custom_call.1} parent=47 // pred_check_branch
          %469 = sbr.rel (%p467) target = $region52
        $region51: #{tpu_custom_call.1} parent=47 // pred_region
          %s470 = sand.u32 %s106, 1
          %s471 = scalar_lea.sflag [#allocation5], %s470
          %s472 = sand.u32 %s106, 1
          %s473 = smul.addr %s472, 32
          %s474 = scalar_lea.vmem [#allocation8], %s473
          %475 = dma.done %s471, 512
        $region52: #{tpu_custom_call.1} parent=47 // pred_fallthru
          _
      $region48: #{tpu_custom_call.1} parent=5 // pred_fallthru
        _
    $region6: #{tpu_custom_call.1} parent=1 // loop_footer
      %s23 = sadd.s32 1, %s19
    $region7: #{tpu_custom_call.1} parent=1 // loop_footer_branch
      %18 = sbr.rel target = $region3
    $region8: #{tpu_custom_call.1} parent=1 // loop_exit
      _
    %476 = vsyncpa [#allocation4], 1
    %s477 = scalar_lea.sflag [#allocation4], 1
    %478 = vsyncpa %s477, 1
    %479 = vsyncpa [#allocation7], 1
    %s480 = scalar_lea.sflag [#allocation7], 1
    %481 = vsyncpa %s480, 1
    %482 = vsyncpa [#allocation5], 1
    %s483 = scalar_lea.sflag [#allocation5], 1
    %484 = vsyncpa %s483, 1

</llo_original>
